<compile_context>
chip_gen: v6e
topology: v6e:2x2x1
jax: 0.10.0
libtpu: 0.0.40
codegen_flags: <defaults>
</compile_context>

<pallas_src>
import jax
import jax.numpy as jnp
from jax.experimental import pallas as pl
from jax.experimental.pallas import tpu as pltpu


def _round_up(x, m):
    return ((x + m - 1) // m) * m


def _vmem_cap_bytes():
    """Per-core VMEM capacity; conservative fallback (v7x = 64 MiB) if unknown."""
    try:
        info = pltpu.get_tpu_info()
        cap = getattr(info, "vmem_capacity_bytes", None)
        if cap:
            return int(cap)
    except Exception:
        pass
    return 64 << 20


def _proj_kernel(feat_ref, cj_ref, w_ref, x_ref):
    # X = (feat * cj) @ W, computed once per src row (hoisted out of the dst loop).
    xf = feat_ref[...] * cj_ref[...]
    x_ref[...] = jnp.dot(xf, w_ref[...], preferred_element_type=jnp.float32).astype(x_ref.dtype)


def _agg_kernel(adj_ref, x_ref, ci_ref, out_ref, acc_ref):
    # grid = (dst tiles [parallel], src tiles [reduction, last])
    k = pl.program_id(1)

    @pl.when(k == 0)
    def _():
        acc_ref[...] = jnp.zeros_like(acc_ref)

    # bf16 x bf16 -> f32 accumulate on the MXU.
    acc_ref[...] += jnp.dot(adj_ref[...], x_ref[...], preferred_element_type=jnp.float32)

    @pl.when(k == pl.num_programs(1) - 1)
    def _():
        out_ref[...] = (acc_ref[...] * ci_ref[...]).astype(out_ref.dtype)


def gcmc_graphconv(feat, weight, cj, adj, ci, *, tm=1024, tk=1024):
    """Fused GCMC graph-conv forward.

    feat   : [N_src, in_feats] float  (or 1-D int node-id array -> rows of `weight`)
    weight : [in_feats, out_feats] float
    cj     : [N_src, 1] float   per-src normalizer
    adj    : [N_dst, N_src]     dense 0/1 dst<-src adjacency
    ci     : [N_dst, 1] float   per-dst normalizer
    returns [N_dst, out_feats] float32
    """
    n_dst, n_src = adj.shape
    out_feats = weight.shape[1]
    vmem_cap = _vmem_cap_bytes()

    # Lane-dense output: pad the feature dim to a multiple of 128.
    f_pad = _round_up(out_feats, 128)
    # Src (reduction) tile: multiple of 128 (lane dim of adj tile / sublane dim of X tile).
    tk = max(128, min(tk, _round_up(n_src, 128)))
    n_src_pad = _round_up(n_src, tk)
    # Dst tile: multiple of 8 (sublane dim of adj / out tiles).
    tm = max(8, min(tm, _round_up(n_dst, 8)))
    n_dst_pad = _round_up(n_dst, tm)

    # ---- pad / cast inputs --------------------------------------------------
    w_p = jnp.pad(weight.astype(jnp.float32), ((0, 0), (0, f_pad - out_feats)))
    cj_p = jnp.pad(cj.astype(jnp.float32), ((0, n_src_pad - n_src), (0, 0)))
    ci_p = jnp.pad(ci.astype(jnp.float32), ((0, n_dst_pad - n_dst), (0, 0)))
    # adj is 0/1 -> bf16 is exact and halves the dominant HBM stream.
    adj_p = jnp.pad(adj, ((0, n_dst_pad - n_dst), (0, n_src_pad - n_src))).astype(jnp.bfloat16)

    # ---- stage 1: X = (feat * cj) @ W (hoisted out of the dst loop) ---------
    if feat.ndim == 1:
        # dot_or_identity 1-D branch: node ids index rows of W; skip the matmul
        # entirely (no identity-matrix multiply).
        x_rows = jnp.take(w_p, feat, axis=0) * cj.astype(jnp.float32)
        x = jnp.pad(x_rows, ((0, n_src_pad - n_src), (0, 0))).astype(jnp.bfloat16)
    else:
        in_feats = feat.shape[1]
        feat_p = jnp.pad(feat.astype(jnp.float32), ((0, n_src_pad - n_src), (0, 0)))
        proj_vmem = (2 * tk * in_feats * 4 + 2 * tk * 4
                     + 2 * in_feats * f_pad * 4 + 2 * tk * f_pad * 2)
        x = pl.pallas_call(
            _proj_kernel,
            out_shape=jax.ShapeDtypeStruct((n_src_pad, f_pad), jnp.bfloat16),
            grid_spec=pltpu.PrefetchScalarGridSpec(
                num_scalar_prefetch=0,
                grid=(n_src_pad // tk,),
                in_specs=[
                    pl.BlockSpec((tk, in_feats), lambda s: (s, 0)),     # feat tile
                    pl.BlockSpec((tk, 1), lambda s: (s, 0)),            # cj tile
                    pl.BlockSpec((in_feats, f_pad), lambda s: (0, 0)),  # W (resident)
                ],
                out_specs=pl.BlockSpec((tk, f_pad), lambda s: (s, 0)),
            ),
            compiler_params=pltpu.CompilerParams(
                dimension_semantics=("parallel",),
                vmem_limit_bytes=int(min(max(2 * proj_vmem, 32 << 20), vmem_cap * 3 // 4)),
            ),
        )(feat_p, cj_p, w_p)

    # ---- stage 2: out = (A @ X) * ci, tiled + pipelined over (dst, src) -----
    grid = (n_dst_pad // tm, n_src_pad // tk)
    agg_vmem = (2 * tm * tk * 2          # adj tiles (bf16, double-buffered)
                + 2 * tk * f_pad * 2     # X tiles
                + 2 * tm * 4             # ci tiles
                + 2 * tm * f_pad * 4     # out tiles
                + tm * f_pad * 4)        # f32 accumulator scratch
    cost = pl.CostEstimate(
        flops=2 * n_dst_pad * n_src_pad * f_pad,
        transcendentals=0,
        bytes_accessed=(n_dst_pad * n_src_pad * 2            # adj stream
                        + grid[0] * n_src_pad * f_pad * 2    # X re-read per dst tile
                        + n_dst_pad * f_pad * 4              # out
                        + n_dst_pad * 4),                    # ci
    )
    out_p = pl.pallas_call(
        _agg_kernel,
        out_shape=jax.ShapeDtypeStruct((n_dst_pad, f_pad), jnp.float32),
        grid_spec=pltpu.PrefetchScalarGridSpec(
            num_scalar_prefetch=0,
            grid=grid,
            in_specs=[
                pl.BlockSpec((tm, tk), lambda i, k: (i, k)),     # adj
                pl.BlockSpec((tk, f_pad), lambda i, k: (k, 0)),  # X
                pl.BlockSpec((tm, 1), lambda i, k: (i, 0)),      # ci
            ],
            out_specs=pl.BlockSpec((tm, f_pad), lambda i, k: (i, 0)),
            scratch_shapes=[pltpu.VMEM((tm, f_pad), jnp.float32)],
        ),
        compiler_params=pltpu.CompilerParams(
            dimension_semantics=("parallel", "arbitrary"),
            vmem_limit_bytes=int(min(max(2 * agg_vmem, 32 << 20), vmem_cap * 3 // 4)),
        ),
        cost_estimate=cost,
    )(adj_p, x, ci_p)

    return out_p[:n_dst, :out_feats]


def reference(feat, weight, cj, adj, ci):
    if feat.ndim == 1:
        x = jnp.take(weight, feat, axis=0)
    else:
        x = feat @ weight
    x = x * cj
    h = adj @ x
    return h * ci


if __name__ == "__main__":
    key = jax.random.PRNGKey(0)
    k_feat, k_w, k_adj, k_ids = jax.random.split(key, 4)

    # Small synthetic bipartite graph: 64 src nodes -> 32 dst nodes.
    N_SRC, N_DST = 64, 32
    IN_FEATS, OUT_FEATS = 32, 16

    feat = jax.random.normal(k_feat, (N_SRC, IN_FEATS), dtype=jnp.float32)

    # Deterministic Xavier-uniform init for the weight (matches nn.init.xavier_uniform_).
    bound = (6.0 / (IN_FEATS + OUT_FEATS)) ** 0.5
    weight = jax.random.uniform(
        k_w, (IN_FEATS, OUT_FEATS), dtype=jnp.float32, minval=-bound, maxval=bound
    )

    # Random 0/1 adjacency (dst rows, src cols).
    adj = (jax.random.uniform(k_adj, (N_DST, N_SRC)) < 0.2).astype(jnp.float32)

    # GCMC normalizers: cj = 1/sqrt(out-degree of src), ci = 1/sqrt(in-degree of dst).
    out_deg = jnp.maximum(adj.sum(axis=0), 1.0)  # [N_SRC]
    in_deg = jnp.maximum(adj.sum(axis=1), 1.0)   # [N_DST]
    cj = (1.0 / jnp.sqrt(out_deg)).reshape(N_SRC, 1).astype(jnp.float32)
    ci = (1.0 / jnp.sqrt(in_deg)).reshape(N_DST, 1).astype(jnp.float32)

    # --- 2-D feat path (projection + aggregation) ---
    out = jax.block_until_ready(gcmc_graphconv(feat, weight, cj, adj, ci))
    ref = reference(feat, weight, cj, adj, ci)
    assert out.shape == (N_DST, OUT_FEATS)
    # bf16 message quantization in the aggregation -> modest tolerance vs f32 reference.
    assert jnp.allclose(out, ref, atol=2e-2, rtol=2e-2), "2-D feat path mismatch vs reference"

    # --- 1-D feat path (node-id gather, no identity matmul) ---
    feat_ids = jax.random.randint(k_ids, (N_SRC,), 0, IN_FEATS)
    out1 = jax.block_until_ready(gcmc_graphconv(feat_ids, weight, cj, adj, ci))
    ref1 = reference(feat_ids, weight, cj, adj, ci)
    assert out1.shape == (N_DST, OUT_FEATS)
    assert jnp.allclose(out1, ref1, atol=2e-2, rtol=2e-2), "1-D feat path mismatch vs reference"

    print("KERNEL_OK")
</pallas_src>

<mosaic_0001>
module attributes {stable_mosaic.version = 11 : i64} {
  func.func @_proj_kernel(%arg0: i32, %arg1: memref<128x32xf32, #tpu.memory_space<vmem>>, %arg2: memref<128x1xf32, #tpu.memory_space<vmem>>, %arg3: memref<32x128xf32, #tpu.memory_space<vmem>>, %arg4: memref<128x128xbf16, #tpu.memory_space<vmem>>) attributes {dimension_semantics = [#tpu.dimension_semantics<parallel>], iteration_bounds = array<i64: 1>, scalar_prefetch = 0 : i64, scratch_operands = 0 : i64, tpu.core_type = #tpu.core_type<tc>, window_params = [{transform_indices = @transform_0, window_bounds = array<i64: 128, 32>}, {transform_indices = @transform_1, window_bounds = array<i64: 128, 1>}, {pipeline_mode = #tpu.pipeline_mode<synchronous>, transform_indices = @transform_2, window_bounds = array<i64: 32, 128>}, {transform_indices = @transform_3, window_bounds = array<i64: 128, 128>}]} {
    %c0 = arith.constant 0 : index
    %c0_0 = arith.constant 0 : index
    %0 = vector.load %arg1[%c0, %c0_0] : memref<128x32xf32, #tpu.memory_space<vmem>>, vector<128x32xf32>
    %c0_1 = arith.constant 0 : index
    %c0_2 = arith.constant 0 : index
    %1 = vector.load %arg2[%c0_1, %c0_2] : memref<128x1xf32, #tpu.memory_space<vmem>>, vector<128x1xf32>
    %2 = vector.broadcast %1 : vector<128x1xf32> to vector<128x32xf32>
    %3 = arith.mulf %0, %2 : vector<128x32xf32>
    %c0_3 = arith.constant 0 : index
    %c0_4 = arith.constant 0 : index
    %4 = vector.load %arg3[%c0_3, %c0_4] : memref<32x128xf32, #tpu.memory_space<vmem>>, vector<32x128xf32>
    %cst = arith.constant dense<0.000000e+00> : vector<128x128xf32>
    %5 = tpu.matmul %3, %4, %cst {dimension_numbers = #tpu.dot_dimension_numbers<[1], [0], [0], [1], [0, 0, 1, 1], [], []>} : vector<128x32xf32>, vector<32x128xf32>, vector<128x128xf32> -> vector<128x128xf32>
    %6 = arith.truncf %5 : vector<128x128xf32> to vector<128x128xbf16>
    %c0_5 = arith.constant 0 : index
    %c0_6 = arith.constant 0 : index
    %7 = vector.load %arg4[%c0_5, %c0_6] : memref<128x128xbf16, #tpu.memory_space<vmem>>, vector<128x128xbf16>
    tpu.vector_store %arg4[%c0_5, %c0_6], %6 {strides = array<i32>} : memref<128x128xbf16, #tpu.memory_space<vmem>>, vector<128x128xbf16>,
    return
  }
  func.func @transform_0(%arg0: i32) -> (i32, i32) {
    %c0_i32 = arith.constant 0 : i32
    %c0_i32_0 = arith.constant 0 : i32
    return %arg0, %c0_i32 : i32, i32
  }
  func.func @transform_1(%arg0: i32) -> (i32, i32) {
    %c0_i32 = arith.constant 0 : i32
    %c0_i32_0 = arith.constant 0 : i32
    return %arg0, %c0_i32 : i32, i32
  }
  func.func @transform_2(%arg0: i32) -> (i32, i32) {
    %c0_i32 = arith.constant 0 : i32
    %c0_i32_0 = arith.constant 0 : i32
    %c0_i32_1 = arith.constant 0 : i32
    return %c0_i32, %c0_i32_0 : i32, i32
  }
  func.func @transform_3(%arg0: i32) -> (i32, i32) {
    %c0_i32 = arith.constant 0 : i32
    %c0_i32_0 = arith.constant 0 : i32
    return %arg0, %c0_i32 : i32, i32
  }
}

</mosaic_0001>

<llo_original>
// kernel: tpu_custom_call.1
$region0: #{tpu_custom_call.1}
  #allocation0 [shape = 'u32[]', space=smem, size = 0x4, offset = 0x4, fixed_abs, tag = 'smem constant byte address 0x4 - core index']
  #allocation1 [shape = 'u32[144,128]{1,0:T(1,128)}', space=vmem, size = 0x12000, scoped, tag = 'internal scratch']
  %s0 = inlined_call_operand.vmem [shape: f32[128,32], index: 0, kind: input, shape index: {}]
  %s1 = inlined_call_operand.vmem [shape: f32[128,1], index: 1, kind: input, shape index: {}]
  %s2 = inlined_call_operand.vmem [shape: f32[32,128], index: 2, kind: input, shape index: {}]
  %s3 = inlined_call_operand.hbm [shape: bf16[128,128], index: 3, kind: output, shape index: {}]
  %s4 = sld [smem:[#allocation0]]
  $region22: #{tpu_custom_call.1} parent=0
    _
  %s6 = ssub.s32 1, %s4
  %s7 = scalar_select 0, %s6, %s4
  $region1: #{tpu_custom_call.1} parent=0
    #allocation2 [shape = 'u8[32768]{0}', space=vmem, size = 0x8000, scoped, tag = 'output window, operand 0, single buffered']
    #allocation3 [shape = 's32[1]{0}', space=sflag, size = 0x4, scoped, tag = 'scoped memory for tpu_custom_call.1']
    %8 = vsyncpa [#allocation3], 0
    // Predicated region
    $region2: #{tpu_custom_call.1} parent=1 // pred_check
      _
    $region3: #{tpu_custom_call.1} parent=1 // pred_check_branch
      %10 = sbr.rel (0) target = $region5
    $region4: #{tpu_custom_call.1} parent=1 // pred_region
      _
    $region5: #{tpu_custom_call.1} parent=1 // pred_fallthru
      _
    // Predicated region
    $region6: #{tpu_custom_call.1} parent=1 // pred_check
      _
    $region7: #{tpu_custom_call.1} parent=1 // pred_check_branch
      %12 = sbr.rel (0) target = $region9
    $region8: #{tpu_custom_call.1} parent=1 // pred_region
      _
    $region9: #{tpu_custom_call.1} parent=1 // pred_fallthru
      _
    // Predicated region
    $region10: #{tpu_custom_call.1} parent=1 // pred_check
      _
    $region11: #{tpu_custom_call.1} parent=1 // pred_check_branch
      %14 = sbr.rel (0) target = $region13
    $region12: #{tpu_custom_call.1} parent=1 // pred_region
      _
    $region13: #{tpu_custom_call.1} parent=1 // pred_fallthru
      _
    %v15 = vld [vmem:[%s0] sm:$0xff]
    %v16 = vld [vmem:[%s0 + $0x8] sm:$0xff]
    %v17 = vld [vmem:[%s0 + $0x10] sm:$0xff]
    %v18 = vld [vmem:[%s0 + $0x18] sm:$0xff]
    %v19 = vld [vmem:[%s0 + $0x20] sm:$0xff]
    %v20 = vld [vmem:[%s0 + $0x28] sm:$0xff]
    %v21 = vld [vmem:[%s0 + $0x30] sm:$0xff]
    %v22 = vld [vmem:[%s0 + $0x38] sm:$0xff]
    %v23 = vld [vmem:[%s0 + $0x40] sm:$0xff]
    %v24 = vld [vmem:[%s0 + $0x48] sm:$0xff]
    %v25 = vld [vmem:[%s0 + $0x50] sm:$0xff]
    %v26 = vld [vmem:[%s0 + $0x58] sm:$0xff]
    %v27 = vld [vmem:[%s0 + $0x60] sm:$0xff]
    %v28 = vld [vmem:[%s0 + $0x68] sm:$0xff]
    %v29 = vld [vmem:[%s0 + $0x70] sm:$0xff]
    %v30 = vld [vmem:[%s0 + $0x78] sm:$0xff]
    %v31 = vld [vmem:[%s1] sm:$0xff]
    %v32 = vld [vmem:[%s1 + $0x8] sm:$0xff]
    %v33 = vld [vmem:[%s1 + $0x10] sm:$0xff]
    %v34 = vld [vmem:[%s1 + $0x18] sm:$0xff]
    %v35 = vld [vmem:[%s1 + $0x20] sm:$0xff]
    %v36 = vld [vmem:[%s1 + $0x28] sm:$0xff]
    %v37 = vld [vmem:[%s1 + $0x30] sm:$0xff]
    %v38 = vld [vmem:[%s1 + $0x38] sm:$0xff]
    %v39 = vld [vmem:[%s1 + $0x40] sm:$0xff]
    %v40 = vld [vmem:[%s1 + $0x48] sm:$0xff]
    %v41 = vld [vmem:[%s1 + $0x50] sm:$0xff]
    %v42 = vld [vmem:[%s1 + $0x58] sm:$0xff]
    %v43 = vld [vmem:[%s1 + $0x60] sm:$0xff]
    %v44 = vld [vmem:[%s1 + $0x68] sm:$0xff]
    %v45 = vld [vmem:[%s1 + $0x70] sm:$0xff]
    %v46 = vld [vmem:[%s1 + $0x78] sm:$0xff]
    %48 = vset.pattern.permute.xlu0 0
    %49 = vperm.xlu0 %48, %v31
    %v50 = vpop.permute.xlu0 %49
    %53 = vset.pattern.permute.xlu0 0
    %54 = vperm.xlu0 %53, %v32
    %v55 = vpop.permute.xlu0 %54
    %58 = vset.pattern.permute.xlu0 0
    %59 = vperm.xlu0 %58, %v33
    %v60 = vpop.permute.xlu0 %59
    %63 = vset.pattern.permute.xlu0 0
    %64 = vperm.xlu0 %63, %v34
    %v65 = vpop.permute.xlu0 %64
    %68 = vset.pattern.permute.xlu0 0
    %69 = vperm.xlu0 %68, %v35
    %v70 = vpop.permute.xlu0 %69
    %73 = vset.pattern.permute.xlu0 0
    %74 = vperm.xlu0 %73, %v36
    %v75 = vpop.permute.xlu0 %74
    %78 = vset.pattern.permute.xlu0 0
    %79 = vperm.xlu0 %78, %v37
    %v80 = vpop.permute.xlu0 %79
    %83 = vset.pattern.permute.xlu0 0
    %84 = vperm.xlu0 %83, %v38
    %v85 = vpop.permute.xlu0 %84
    %88 = vset.pattern.permute.xlu0 0
    %89 = vperm.xlu0 %88, %v39
    %v90 = vpop.permute.xlu0 %89
    %93 = vset.pattern.permute.xlu0 0
    %94 = vperm.xlu0 %93, %v40
    %v95 = vpop.permute.xlu0 %94
    %98 = vset.pattern.permute.xlu0 0
    %99 = vperm.xlu0 %98, %v41
    %v100 = vpop.permute.xlu0 %99
    %103 = vset.pattern.permute.xlu0 0
    %104 = vperm.xlu0 %103, %v42
    %v105 = vpop.permute.xlu0 %104
    %108 = vset.pattern.permute.xlu0 0
    %109 = vperm.xlu0 %108, %v43
    %v110 = vpop.permute.xlu0 %109
    %113 = vset.pattern.permute.xlu0 0
    %114 = vperm.xlu0 %113, %v44
    %v115 = vpop.permute.xlu0 %114
    %118 = vset.pattern.permute.xlu0 0
    %119 = vperm.xlu0 %118, %v45
    %v120 = vpop.permute.xlu0 %119
    %123 = vset.pattern.permute.xlu0 0
    %124 = vperm.xlu0 %123, %v46
    %v125 = vpop.permute.xlu0 %124
    %v127 = vmul.f32 %v15, %v50
    %v128 = vmul.f32 %v16, %v55
    %v129 = vmul.f32 %v17, %v60
    %v130 = vmul.f32 %v18, %v65
    %v131 = vmul.f32 %v19, %v70
    %v132 = vmul.f32 %v20, %v75
    %v133 = vmul.f32 %v21, %v80
    %v134 = vmul.f32 %v22, %v85
    %v135 = vmul.f32 %v23, %v90
    %v136 = vmul.f32 %v24, %v95
    %v137 = vmul.f32 %v25, %v100
    %v138 = vmul.f32 %v26, %v105
    %v139 = vmul.f32 %v27, %v110
    %v140 = vmul.f32 %v28, %v115
    %v141 = vmul.f32 %v29, %v120
    %v142 = vmul.f32 %v30, %v125
    %v143 = vld [vmem:[%s2] sm:$0xff]
    %v144 = vld [vmem:[%s2 + $0x8] sm:$0xff]
    %v145 = vld [vmem:[%s2 + $0x10] sm:$0xff]
    %v146 = vld [vmem:[%s2 + $0x18] sm:$0xff]
    %vm147 = vcmask 261120
    %v149 = vsel %vm147, %v127, 0
    %v152 = vsel %vm147, %v128, 0
    %v155 = vsel %vm147, %v129, 0
    %v158 = vsel %vm147, %v130, 0
    %v161 = vsel %vm147, %v131, 0
    %v164 = vsel %vm147, %v132, 0
    %v167 = vsel %vm147, %v133, 0
    %v170 = vsel %vm147, %v134, 0
    %v173 = vsel %vm147, %v135, 0
    %v176 = vsel %vm147, %v136, 0
    %v179 = vsel %vm147, %v137, 0
    %v182 = vsel %vm147, %v138, 0
    %v185 = vsel %vm147, %v139, 0
    %v188 = vsel %vm147, %v140, 0
    %v191 = vsel %vm147, %v141, 0
    %v194 = vsel %vm147, %v142, 0
    %196 = vmatprep.subr.mxu0 0.0
    %197 = vmatpush1.msra.mxu0 0.0
    %198 = vmatprep.subr.mxu0 0.0
    %199 = vmatpush1.msra.mxu0 0.0
    %200 = vmatprep.subr.mxu0 0.0
    %201 = vmatpush1.msra.mxu0 0.0
    %202 = vmatprep.subr.mxu0 0.0
    %203 = vmatpush1.msra.mxu0 0.0
    %204 = vmatprep.subr.mxu0 0.0
    %205 = vmatpush1.msra.mxu0 0.0
    %206 = vmatprep.subr.mxu0 0.0
    %207 = vmatpush1.msra.mxu0 0.0
    %208 = vmatprep.subr.mxu0 0.0
    %209 = vmatpush1.msra.mxu0 0.0
    %210 = vmatprep.subr.mxu0 0.0
    %211 = vmatpush1.msra.mxu0 0.0
    %212 = vmatprep.subr.mxu0 0.0
    %213 = vmatpush1.msra.mxu0 0.0
    %214 = vmatprep.subr.mxu0 0.0
    %215 = vmatpush1.msra.mxu0 0.0
    %216 = vmatprep.subr.mxu0 0.0
    %217 = vmatpush1.msra.mxu0 0.0
    %218 = vmatprep.subr.mxu0 0.0
    %219 = vmatpush1.msra.mxu0 0.0
    %220 = vmatprep.subr.mxu0 0.0
    %221 = vmatpush1.msra.mxu0 %v146
    %222 = vmatprep.subr.mxu0 0.0
    %223 = vmatpush1.msra.mxu0 %v145
    %224 = vmatprep.subr.mxu0 0.0
    %225 = vmatpush1.msra.mxu0 %v144
    %226 = vmatprep.subr.mxu0 0.0
    %227 = vmatpush1.msra.mxu0 %v143
    %228 = vmatprep.subr.mxu0 0.0
    %229 = vmatpush2.msra.mxu0 0.0
    %230 = vmatprep.subr.mxu0 0.0
    %231 = vmatpush2.msra.mxu0 0.0
    %232 = vmatprep.subr.mxu0 0.0
    %233 = vmatpush2.msra.mxu0 0.0
    %234 = vmatprep.subr.mxu0 0.0
    %235 = vmatpush2.msra.mxu0 0.0
    %236 = vmatprep.subr.mxu0 0.0
    %237 = vmatpush2.msra.mxu0 0.0
    %238 = vmatprep.subr.mxu0 0.0
    %239 = vmatpush2.msra.mxu0 0.0
    %240 = vmatprep.subr.mxu0 0.0
    %241 = vmatpush2.msra.mxu0 0.0
    %242 = vmatprep.subr.mxu0 0.0
    %243 = vmatpush2.msra.mxu0 0.0
    %244 = vmatprep.subr.mxu0 0.0
    %245 = vmatpush2.msra.mxu0 0.0
    %246 = vmatprep.subr.mxu0 0.0
    %247 = vmatpush2.msra.mxu0 0.0
    %248 = vmatprep.subr.mxu0 0.0
    %249 = vmatpush2.msra.mxu0 0.0
    %250 = vmatprep.subr.mxu0 0.0
    %251 = vmatpush2.msra.mxu0 0.0
    %252 = vmatprep.subr.mxu0 0.0
    %253 = vmatpush2.msra.mxu0 0.0
    %254 = vmatprep.subr.mxu0 0.0
    %255 = vmatpush2.msra.mxu0 0.0
    %256 = vmatprep.subr.mxu0 0.0
    %257 = vmatpush2.msra.mxu0 0.0
    %258 = vmatprep.subr.mxu0 0.0
    %259 = vmatpush2.msra.mxu0 0.0
    %260 = vmatprep.mubr.f32.mxu0 0.0
    %261 = vmatmul.mubr.f32.gmra.mxu0 %v149
    %v262 = vpop.f32.mrf.mxu0
    %v263 = vadd.f32 0.0, %v262
    %v264 = vpop.f32.mrf.mxu0
    %265 = vmatprep.mubr.f32.mxu0 0.0
    %266 = vmatmul.mubr.f32.gmra.mxu0 %v152
    %v267 = vpop.f32.mrf.mxu0
    %v268 = vadd.f32 0.0, %v267
    %v269 = vpop.f32.mrf.mxu0
    %270 = vmatprep.mubr.f32.mxu0 0.0
    %271 = vmatmul.mubr.f32.gmra.mxu0 %v155
    %v272 = vpop.f32.mrf.mxu0
    %v273 = vadd.f32 0.0, %v272
    %v274 = vpop.f32.mrf.mxu0
    %275 = vmatprep.mubr.f32.mxu0 0.0
    %276 = vmatmul.mubr.f32.gmra.mxu0 %v158
    %v277 = vpop.f32.mrf.mxu0
    %v278 = vadd.f32 0.0, %v277
    %v279 = vpop.f32.mrf.mxu0
    %280 = vmatprep.mubr.f32.mxu0 0.0
    %281 = vmatmul.mubr.f32.gmra.mxu0 %v161
    %v282 = vpop.f32.mrf.mxu0
    %v283 = vadd.f32 0.0, %v282
    %v284 = vpop.f32.mrf.mxu0
    %285 = vmatprep.mubr.f32.mxu0 0.0
    %286 = vmatmul.mubr.f32.gmra.mxu0 %v164
    %v287 = vpop.f32.mrf.mxu0
    %v288 = vadd.f32 0.0, %v287
    %v289 = vpop.f32.mrf.mxu0
    %290 = vmatprep.mubr.f32.mxu0 0.0
    %291 = vmatmul.mubr.f32.gmra.mxu0 %v167
    %v292 = vpop.f32.mrf.mxu0
    %v293 = vadd.f32 0.0, %v292
    %v294 = vpop.f32.mrf.mxu0
    %295 = vmatprep.mubr.f32.mxu0 0.0
    %296 = vmatmul.mubr.f32.gmra.mxu0 %v170
    %v297 = vpop.f32.mrf.mxu0
    %v298 = vadd.f32 0.0, %v297
    %v299 = vpop.f32.mrf.mxu0
    %300 = vmatprep.mubr.f32.mxu0 0.0
    %301 = vmatmul.mubr.f32.gmra.mxu0 %v173
    %v302 = vpop.f32.mrf.mxu0
    %v303 = vadd.f32 0.0, %v302
    %v304 = vpop.f32.mrf.mxu0
    %305 = vmatprep.mubr.f32.mxu0 0.0
    %306 = vmatmul.mubr.f32.gmra.mxu0 %v176
    %v307 = vpop.f32.mrf.mxu0
    %v308 = vadd.f32 0.0, %v307
    %v309 = vpop.f32.mrf.mxu0
    %310 = vmatprep.mubr.f32.mxu0 0.0
    %311 = vmatmul.mubr.f32.gmra.mxu0 %v179
    %v312 = vpop.f32.mrf.mxu0
    %v313 = vadd.f32 0.0, %v312
    %v314 = vpop.f32.mrf.mxu0
    %315 = vmatprep.mubr.f32.mxu0 0.0
    %316 = vmatmul.mubr.f32.gmra.mxu0 %v182
    %v317 = vpop.f32.mrf.mxu0
    %v318 = vadd.f32 0.0, %v317
    %v319 = vpop.f32.mrf.mxu0
    %320 = vmatprep.mubr.f32.mxu0 0.0
    %321 = vmatmul.mubr.f32.gmra.mxu0 %v185
    %v322 = vpop.f32.mrf.mxu0
    %v323 = vadd.f32 0.0, %v322
    %v324 = vpop.f32.mrf.mxu0
    %325 = vmatprep.mubr.f32.mxu0 0.0
    %326 = vmatmul.mubr.f32.gmra.mxu0 %v188
    %v327 = vpop.f32.mrf.mxu0
    %v328 = vadd.f32 0.0, %v327
    %v329 = vpop.f32.mrf.mxu0
    %330 = vmatprep.mubr.f32.mxu0 0.0
    %331 = vmatmul.mubr.f32.gmra.mxu0 %v191
    %v332 = vpop.f32.mrf.mxu0
    %v333 = vadd.f32 0.0, %v332
    %v334 = vpop.f32.mrf.mxu0
    %335 = vmatprep.mubr.f32.mxu0 0.0
    %336 = vmatmul.mubr.f32.gmra.mxu0 %v194
    %v337 = vpop.f32.mrf.mxu0
    %v338 = vadd.f32 0.0, %v337
    %v339 = vpop.f32.mrf.mxu0
    %340 = vdwg.mxu0
    %v341 = vpack.c.bf16 %v268, %v263
    %v342 = vpack.c.bf16 %v278, %v273
    %v343 = vpack.c.bf16 %v288, %v283
    %v344 = vpack.c.bf16 %v298, %v293
    %v345 = vpack.c.bf16 %v308, %v303
    %v346 = vpack.c.bf16 %v318, %v313
    %v347 = vpack.c.bf16 %v328, %v323
    %v348 = vpack.c.bf16 %v338, %v333
    %v357 = vunpack.c.l.b16 %v341
    %v358 = vunpack.c.h.b16 %v341
    %v359 = vunpack.c.l.b16 %v342
    %v360 = vunpack.c.h.b16 %v342
    %v361 = vunpack.c.l.b16 %v343
    %v362 = vunpack.c.h.b16 %v343
    %v363 = vunpack.c.l.b16 %v344
    %v364 = vunpack.c.h.b16 %v344
    %v365 = vunpack.c.l.b16 %v345
    %v366 = vunpack.c.h.b16 %v345
    %v367 = vunpack.c.l.b16 %v346
    %v368 = vunpack.c.h.b16 %v346
    %v369 = vunpack.c.l.b16 %v347
    %v370 = vunpack.c.h.b16 %v347
    %v371 = vunpack.c.l.b16 %v348
    %v372 = vunpack.c.h.b16 %v348
    %v373 = vpack.c.b16 %v357, %v357
    %v374 = vpack.c.b16 %v358, %v358
    %v375 = vpack.c.b16 %v359, %v359
    %v376 = vpack.c.b16 %v360, %v360
    %v377 = vpack.c.b16 %v361, %v361
    %v378 = vpack.c.b16 %v362, %v362
    %v379 = vpack.c.b16 %v363, %v363
    %v380 = vpack.c.b16 %v364, %v364
    %v381 = vpack.c.b16 %v365, %v365
    %v382 = vpack.c.b16 %v366, %v366
    %v383 = vpack.c.b16 %v367, %v367
    %v384 = vpack.c.b16 %v368, %v368
    %v385 = vpack.c.b16 %v369, %v369
    %v386 = vpack.c.b16 %v370, %v370
    %v387 = vpack.c.b16 %v371, %v371
    %v388 = vpack.c.b16 %v372, %v372
    %405 = vst [vmem:[#allocation2] sm:$0xf] %v373
    %406 = vst [vmem:[#allocation2 + $0x4] sm:$0xf] %v374
    %407 = vst [vmem:[#allocation2 + $0x8] sm:$0xf] %v375
    %408 = vst [vmem:[#allocation2 + $0xc] sm:$0xf] %v376
    %409 = vst [vmem:[#allocation2 + $0x10] sm:$0xf] %v377
    %410 = vst [vmem:[#allocation2 + $0x14] sm:$0xf] %v378
    %411 = vst [vmem:[#allocation2 + $0x18] sm:$0xf] %v379
    %412 = vst [vmem:[#allocation2 + $0x1c] sm:$0xf] %v380
    %413 = vst [vmem:[#allocation2 + $0x20] sm:$0xf] %v381
    %414 = vst [vmem:[#allocation2 + $0x24] sm:$0xf] %v382
    %415 = vst [vmem:[#allocation2 + $0x28] sm:$0xf] %v383
    %416 = vst [vmem:[#allocation2 + $0x2c] sm:$0xf] %v384
    %417 = vst [vmem:[#allocation2 + $0x30] sm:$0xf] %v385
    %418 = vst [vmem:[#allocation2 + $0x34] sm:$0xf] %v386
    %419 = vst [vmem:[#allocation2 + $0x38] sm:$0xf] %v387
    %420 = vst [vmem:[#allocation2 + $0x3c] sm:$0xf] %v388
    // Predicated region
    $region14: #{tpu_custom_call.1} parent=1 // pred_check
      _
    $region15: #{tpu_custom_call.1} parent=1 // pred_check_branch
      %422 = sbr.rel (0) target = $region17
    $region16: #{tpu_custom_call.1} parent=1 // pred_region
      %s424 = ssub.s32 1024, 1024
      %425 = vsyncadd [#allocation3], %s424
      %s426 = sshll.u32 [#allocation2], 4
      %s427 = int_to_ptr.vmem [resolvable:$true] %s426
      %432 = dma.vmem_to_hbm [thread:$0]  %s427, 1024, %s3, [#allocation3], 64, 64, 4
    $region17: #{tpu_custom_call.1} parent=1 // pred_fallthru
      _
    // Predicated region
    $region18: #{tpu_custom_call.1} parent=1 // pred_check
      _
    $region19: #{tpu_custom_call.1} parent=1 // pred_check_branch
      %434 = sbr.rel (0) target = $region21
    $region20: #{tpu_custom_call.1} parent=1 // pred_region
      %435 = dma.done [#allocation3], 1024
    $region21: #{tpu_custom_call.1} parent=1 // pred_fallthru
      _
    %436 = vsyncpa [#allocation3], 1

</llo_original>
